<compile_context>
chip_gen: v7x
topology: tpu7x:2x2x1
jax: 0.10.0
libtpu: 0.0.40
codegen_flags: <defaults>
</compile_context>

<pallas_src>
import math

import jax
import jax.numpy as jnp
from jax import lax
from jax.experimental import pallas as pl
from jax.experimental.pallas import tpu as pltpu


# ---------------------------------------------------------------------------
# Small helpers
# ---------------------------------------------------------------------------

def _round_up(x, m):
    return ((x + m - 1) // m) * m


def _vmem_budget_bytes():
    """Per-generation VMEM budget (v5e/v6e: 128 MiB phys, v7x: 64 MiB phys)."""
    cap = 128 * 1024 * 1024
    try:
        info = pltpu.get_tpu_info()
        cap = int(getattr(info, "vmem_capacity_bytes", cap)) or cap
    except Exception:
        pass
    return min(int(cap * 0.7), 64 * 1024 * 1024)


def _tm_candidates(m, cap_list):
    m_cap = _round_up(max(m, 1), 8)
    cands = [t for t in cap_list if t <= m_cap] or [m_cap]
    if m_cap < cap_list[0] and m_cap not in cands:
        cands = [m_cap] + cands
    return cands


def _select_conv_tiles(m, k, coutp, in_item, out_item, budget):
    """Pick (TM, TN). Prefer TN == Coutp so the weights stay VMEM-resident."""
    tm_cands = _tm_candidates(m, (1024, 512, 256, 128, 64, 32, 16, 8))
    for tm in tm_cands:                       # resident weights, grid j == 1
        use = (2 * tm * k * in_item           # lhs block (double buffered)
               + 2 * k * coutp * in_item      # full weight block
               + 2 * tm * coutp * out_item    # output block
               + 2 * coutp * 4)               # bias
        if use <= budget:
            return tm, coutp
    # Fall back to tiling Cout (weights re-streamed; only for very large C).
    # TODO(synk): keep weights resident here too via an in-kernel dynamic slice.
    for tn in (512, 256, 128):
        if coutp % tn:
            continue
        for tm in tm_cands:
            use = (2 * tm * k * in_item + 2 * k * tn * in_item
                   + 2 * tm * tn * out_item + 2 * tn * 4)
            if use <= budget:
                return tm, tn
    return tm_cands[-1], (128 if coutp % 128 == 0 else coutp)


def _select_pool_tiles(r, ow, in_item, out_item, budget):
    tr_cands = _tm_candidates(r, (2048, 1024, 512, 256, 128, 64, 32, 16, 8))
    tq_cands = [ow] + [t for t in (1024, 512, 256, 128) if t < ow and ow % t == 0]
    for tr in tr_cands:
        for tq in tq_cands:
            use = (2 * tr * 2 * (2 * tq) * in_item   # input row-pair block
                   + 2 * tr * tq * out_item          # output block
                   + 2 * (2 * tq) * tq * 4)          # pooling matrix
            if use <= budget:
                return tr, tq
    return tr_cands[-1], tq_cands[-1]


# ---------------------------------------------------------------------------
# Pallas kernels
# ---------------------------------------------------------------------------

def _conv_gemm_kernel(lhs_ref, w_ref, b_ref, o_ref):
    """Single-shot GEMM with the 9 conv taps folded into K.

    lhs_ref: (TM, 9C)  im2col tile (compute dtype)
    w_ref:   (9C, TN)  weights (compute dtype)
    b_ref:   (1, TN)   bias (f32)
    o_ref:   (TM, TN)  output tile (original dtype)
    """
    acc = jnp.dot(lhs_ref[...], w_ref[...], preferred_element_type=jnp.float32)
    o_ref[...] = (acc + b_ref[...]).astype(o_ref.dtype)


def _avgpool_kernel(x_ref, p_ref, o_ref):
    """AvgPool2d(2).

    x_ref: (TR, 2, 2*TQ)  pairs of input rows (free reshape of NCHW)
    p_ref: (2*TQ, TQ)     column-pairing matrix, entries 0.25 / 0.0
    o_ref: (TR, TQ)       pooled output
    """
    r = x_ref[:, 0, :].astype(jnp.float32) + x_ref[:, 1, :].astype(jnp.float32)
    o_ref[...] = jnp.dot(r, p_ref[...],
                         preferred_element_type=jnp.float32).astype(o_ref.dtype)


# ---------------------------------------------------------------------------
# Wrappers
# ---------------------------------------------------------------------------

def downsample_conv(x_nchw, weight_oihw, bias, *, compute_dtype=None):
    """Conv2d(C, C, kernel_size=3, stride=2, padding=1) forward."""
    N, C, H, W = x_nchw.shape
    Cout = weight_oihw.shape[0]
    OH = (H - 1) // 2 + 1          # floor((H + 2*1 - 3)/2) + 1
    OW = (W - 1) // 2 + 1
    M = N * OH * OW
    K = 9 * C
    out_dtype = x_nchw.dtype
    if compute_dtype is None:
        compute_dtype = x_nchw.dtype

    # ---- LHS: stride-2 im2col with the 9 taps folded into K -----------------
    x = jnp.transpose(x_nchw, (0, 2, 3, 1)).astype(compute_dtype)   # NHWC
    xp = jnp.pad(x, ((0, 0), (1, 1), (1, 1), (0, 0)))               # pad = 1
    taps = [xp[:, kh:kh + 2 * OH - 1:2, kw:kw + 2 * OW - 1:2, :]
            for kh in range(3) for kw in range(3)]
    lhs = jnp.concatenate(taps, axis=-1).reshape(M, K)               # (M, 9C)

    # ---- RHS: (Cout, Cin, 3, 3) -> (9C, Coutp); pad lanes only if needed ----
    Coutp = Cout if Cout % 128 == 0 else _round_up(max(Cout, 128), 128)
    w2 = jnp.transpose(weight_oihw, (2, 3, 1, 0)).reshape(K, Cout)
    w2 = w2.astype(compute_dtype)
    b2 = bias.astype(jnp.float32).reshape(1, Cout)
    if Coutp != Cout:
        w2 = jnp.pad(w2, ((0, 0), (0, Coutp - Cout)))
        b2 = jnp.pad(b2, ((0, 0), (0, Coutp - Cout)))

    # ---- tiling (budgeted against this generation's VMEM) -------------------
    in_item = jnp.dtype(compute_dtype).itemsize
    out_item = jnp.dtype(out_dtype).itemsize
    limit = _vmem_budget_bytes()
    TM, TN = _select_conv_tiles(M, K, Coutp, in_item, out_item, int(limit * 0.8))
    Mp = _round_up(M, TM)
    if Mp != M:
        lhs = jnp.pad(lhs, ((0, Mp - M), (0, 0)))
    grid = (Mp // TM, Coutp // TN)

    cost = pl.CostEstimate(
        flops=2 * M * K * Cout,
        transcendentals=0,
        bytes_accessed=(Mp * K * in_item + K * Coutp * in_item
                        + Mp * Coutp * out_item),
    )

    out2d = pl.pallas_call(
        _conv_gemm_kernel,
        out_shape=jax.ShapeDtypeStruct((Mp, Coutp), out_dtype),
        grid_spec=pltpu.PrefetchScalarGridSpec(
            num_scalar_prefetch=0,
            grid=grid,
            in_specs=[
                pl.BlockSpec((TM, K), lambda i, j: (i, 0)),
                pl.BlockSpec((K, TN), lambda i, j: (0, j)),
                pl.BlockSpec((1, TN), lambda i, j: (0, j)),
            ],
            out_specs=pl.BlockSpec((TM, TN), lambda i, j: (i, j)),
        ),
        compiler_params=pltpu.CompilerParams(
            dimension_semantics=("parallel", "parallel"),
            vmem_limit_bytes=limit,
        ),
        cost_estimate=cost,
    )(lhs, w2, b2)

    out = out2d[:M, :Cout].reshape(N, OH, OW, Cout)
    # TODO(synk): return NHWC directly if the surrounding model consumes NHWC.
    return jnp.transpose(out, (0, 3, 1, 2))                          # NCHW


def downsample_pool(x_nchw):
    """AvgPool2d(2) forward (floor semantics, matches torch.nn.AvgPool2d(2))."""
    N, C, H, W = x_nchw.shape
    OH, OW = H // 2, W // 2
    R = N * C * OH
    in_dtype = x_nchw.dtype
    in_item = jnp.dtype(in_dtype).itemsize

    # Row pairs exposed with a free reshape (no transpose, no phase gather):
    # rows[n*C*OH + c*OH + oh, dh, w] = x[n, c, 2*oh + dh, w]
    xe = x_nchw if (H == 2 * OH and W == 2 * OW) else x_nchw[:, :, :2 * OH, :2 * OW]
    rows = xe.reshape(R, 2, 2 * OW)

    limit = _vmem_budget_bytes()
    TR, TQ = _select_pool_tiles(R, OW, in_item, in_item, int(limit * 0.8))
    Rp = _round_up(R, TR)
    if Rp != R:
        rows = jnp.pad(rows, ((0, Rp - R), (0, 0), (0, 0)))

    # Column-pairing matrix: pool_mat[w, w // 2] = 0.25.  The (q, q) diagonal
    # block is identical for every q, so a single resident (2*TQ, TQ) block is
    # shared by all grid steps (constant index map -> DMA'd once).
    r_idx = lax.broadcasted_iota(jnp.int32, (2 * TQ, TQ), 0)
    c_idx = lax.broadcasted_iota(jnp.int32, (2 * TQ, TQ), 1)
    pool_mat = jnp.where(r_idx // 2 == c_idx, 0.25, 0.0).astype(jnp.float32)

    out2d = pl.pallas_call(
        _avgpool_kernel,
        out_shape=jax.ShapeDtypeStruct((Rp, OW), in_dtype),
        grid_spec=pltpu.PrefetchScalarGridSpec(
            num_scalar_prefetch=0,
            grid=(Rp // TR, OW // TQ),
            in_specs=[
                pl.BlockSpec((TR, 2, 2 * TQ), lambda i, q: (i, 0, q)),
                pl.BlockSpec((2 * TQ, TQ), lambda i, q: (0, 0)),
            ],
            out_specs=pl.BlockSpec((TR, TQ), lambda i, q: (i, q)),
        ),
        compiler_params=pltpu.CompilerParams(
            dimension_semantics=("parallel", "parallel"),
            vmem_limit_bytes=limit,
        ),
    )(rows, pool_mat)

    return out2d[:R].reshape(N, C, OH, OW)


class Downsample:
    """JAX/Pallas mirror of the PyTorch Downsample module.

    compute_dtype: dtype fed to the MXU for the conv GEMM (accumulation is
    always f32).  None (default) keeps the input dtype (bit-faithful for f32
    inputs); pass jnp.bfloat16 explicitly for the fast path.
    """

    def __init__(self, n_channels, use_conv=True, *, key, compute_dtype=None):
        self.use_conv = use_conv
        self.compute_dtype = compute_dtype
        if use_conv:
            # Deterministic init, same shapes / bound as nn.Conv2d defaults.
            k_w, k_b = jax.random.split(key)
            fan_in = n_channels * 3 * 3
            bound = 1.0 / math.sqrt(fan_in)
            self.weight = jax.random.uniform(
                k_w, (n_channels, n_channels, 3, 3), jnp.float32, -bound, bound)
            self.bias = jax.random.uniform(
                k_b, (n_channels,), jnp.float32, -bound, bound)

    def __call__(self, x_nchw):
        if self.use_conv:
            return downsample_conv(x_nchw, self.weight, self.bias,
                                   compute_dtype=self.compute_dtype)
        return downsample_pool(x_nchw)


# ---------------------------------------------------------------------------
# Test
# ---------------------------------------------------------------------------

if __name__ == "__main__":
    key = jax.random.PRNGKey(0)
    k_x, k_p = jax.random.split(key)

    N, C, H, W = 2, 4, 16, 16
    x = jax.random.normal(k_x, (N, C, H, W), jnp.float32)

    # ---- use_conv=True, f32 compute (exact semantics check) ----------------
    ds_f32 = Downsample(C, use_conv=True, key=k_p)
    y_f32 = jax.block_until_ready(ds_f32(x))
    ref_f32 = lax.conv_general_dilated(
        x, ds_f32.weight, window_strides=(2, 2),
        padding=((1, 1), (1, 1)),
        dimension_numbers=("NCHW", "OIHW", "NCHW"),
        precision=lax.Precision.HIGHEST,
    ) + ds_f32.bias[None, :, None, None]
    assert y_f32.shape == (N, C, H // 2, W // 2), y_f32.shape
    assert jnp.allclose(y_f32, ref_f32, atol=1e-4, rtol=1e-4)

    # ---- use_conv=True, bf16 compute (perf path, opt-in) --------------------
    ds_bf16 = Downsample(C, use_conv=True, key=k_p, compute_dtype=jnp.bfloat16)
    y_bf16 = jax.block_until_ready(ds_bf16(x))
    x_b = x.astype(jnp.bfloat16).astype(jnp.float32)
    w_b = ds_bf16.weight.astype(jnp.bfloat16).astype(jnp.float32)
    ref_bf16 = lax.conv_general_dilated(
        x_b, w_b, window_strides=(2, 2),
        padding=((1, 1), (1, 1)),
        dimension_numbers=("NCHW", "OIHW", "NCHW"),
        precision=lax.Precision.HIGHEST,
    ) + ds_bf16.bias[None, :, None, None]
    assert y_bf16.shape == (N, C, H // 2, W // 2), y_bf16.shape
    assert jnp.allclose(y_bf16, ref_bf16, atol=1e-2, rtol=1e-2)

    # ---- use_conv=False (AvgPool2d(2)) --------------------------------------
    ds_pool = Downsample(C, use_conv=False, key=k_p)
    y_pool = jax.block_until_ready(ds_pool(x))
    ref_pool = x.reshape(N, C, H // 2, 2, W // 2, 2).mean(axis=(3, 5))
    assert y_pool.shape == (N, C, H // 2, W // 2), y_pool.shape
    assert jnp.allclose(y_pool, ref_pool, atol=1e-5, rtol=1e-5)

    print("KERNEL_OK")
</pallas_src>

<mosaic_0001>
module attributes {stable_mosaic.version = 11 : i64} {
  func.func @_conv_gemm_kernel(%arg0: i32, %arg1: i32, %arg2: memref<128x36xf32, #tpu.memory_space<vmem>>, %arg3: memref<36x128xf32, #tpu.memory_space<vmem>>, %arg4: memref<1x128xf32, #tpu.memory_space<vmem>>, %arg5: memref<128x128xf32, #tpu.memory_space<vmem>>) attributes {dimension_semantics = [#tpu.dimension_semantics<parallel>, #tpu.dimension_semantics<parallel>], iteration_bounds = array<i64: 1, 1>, scalar_prefetch = 0 : i64, scratch_operands = 0 : i64, tpu.core_type = #tpu.core_type<tc>, window_params = [{transform_indices = @transform_0, window_bounds = array<i64: 128, 36>}, {transform_indices = @transform_1, window_bounds = array<i64: 36, 128>}, {transform_indices = @transform_2, window_bounds = array<i64: 1, 128>}, {transform_indices = @transform_3, window_bounds = array<i64: 128, 128>}]} {
    %c0 = arith.constant 0 : index
    %c0_0 = arith.constant 0 : index
    %0 = vector.load %arg2[%c0, %c0_0] : memref<128x36xf32, #tpu.memory_space<vmem>>, vector<128x36xf32>
    %c0_1 = arith.constant 0 : index
    %c0_2 = arith.constant 0 : index
    %1 = vector.load %arg3[%c0_1, %c0_2] : memref<36x128xf32, #tpu.memory_space<vmem>>, vector<36x128xf32>
    %cst = arith.constant dense<0.000000e+00> : vector<128x128xf32>
    %2 = tpu.matmul %0, %1, %cst {dimension_numbers = #tpu.dot_dimension_numbers<[1], [0], [0], [1], [0, 0, 1, 1], [], []>} : vector<128x36xf32>, vector<36x128xf32>, vector<128x128xf32> -> vector<128x128xf32>
    %c0_3 = arith.constant 0 : index
    %c0_4 = arith.constant 0 : index
    %3 = vector.load %arg4[%c0_3, %c0_4] : memref<1x128xf32, #tpu.memory_space<vmem>>, vector<1x128xf32>
    %4 = vector.broadcast %3 : vector<1x128xf32> to vector<128x128xf32>
    %5 = arith.addf %2, %4 : vector<128x128xf32>
    %c0_5 = arith.constant 0 : index
    %c0_6 = arith.constant 0 : index
    %6 = vector.load %arg5[%c0_5, %c0_6] : memref<128x128xf32, #tpu.memory_space<vmem>>, vector<128x128xf32>
    tpu.vector_store %arg5[%c0_5, %c0_6], %5 {strides = array<i32>} : memref<128x128xf32, #tpu.memory_space<vmem>>, vector<128x128xf32>,
    return
  }
  func.func @transform_0(%arg0: i32, %arg1: i32) -> (i32, i32) {
    %c0_i32 = arith.constant 0 : i32
    %c0_i32_0 = arith.constant 0 : i32
    return %arg0, %c0_i32 : i32, i32
  }
  func.func @transform_1(%arg0: i32, %arg1: i32) -> (i32, i32) {
    %c0_i32 = arith.constant 0 : i32
    %c0_i32_0 = arith.constant 0 : i32
    return %c0_i32, %arg1 : i32, i32
  }
  func.func @transform_2(%arg0: i32, %arg1: i32) -> (i32, i32) {
    %c0_i32 = arith.constant 0 : i32
    %c0_i32_0 = arith.constant 0 : i32
    return %c0_i32, %arg1 : i32, i32
  }
  func.func @transform_3(%arg0: i32, %arg1: i32) -> (i32, i32) {
    %c0_i32 = arith.constant 0 : i32
    return %arg0, %arg1 : i32, i32
  }
}

</mosaic_0001>

<llo_original>
// kernel: tpu_custom_call.1
$region0: #{tpu_custom_call.1}
  #allocation0 [shape = 'u32[]', space=smem, size = 0x4, offset = 0x4, fixed_abs, tag = 'smem constant byte address 0x4 - core index']
  #allocation1 [shape = 'u32[144,128]{1,0:T(1,128)}', space=vmem, size = 0x12000, scoped, tag = 'internal scratch']
  %s0 = inlined_call_operand.hbm [shape: f32[128,36], index: 0, kind: input, shape index: {}]
  %s1 = inlined_call_operand.hbm [shape: f32[36,128], index: 1, kind: input, shape index: {}]
  %s2 = inlined_call_operand.hbm [shape: f32[1,128], index: 2, kind: input, shape index: {}]
  %s3 = inlined_call_operand.hbm [shape: f32[128,128], index: 3, kind: output, shape index: {}]
  %s4 = sld [smem:[#allocation0]]
  $region34: #{tpu_custom_call.1} parent=0
    _
  %s6 = ssub.s32 1, %s4
  %s7 = scalar_select 0, %s6, %s4
  $region1: #{tpu_custom_call.1} parent=0
    #allocation2 [shape = 'u8[65536]{0}', space=vmem, size = 0x10000, scoped, tag = 'input window, operand 0, single buffered']
    #allocation3 [shape = 's32[1]{0}', space=sflag, size = 0x4, scoped, tag = 'scoped memory for tpu_custom_call.1']
    #allocation4 [shape = 's32[1]{0}', space=sflag, size = 0x4, scoped, tag = 'scoped memory for tpu_custom_call.1']
    #allocation5 [shape = 'u8[20480]{0}', space=vmem, size = 0x5000, scoped, tag = 'input window, operand 1, single buffered']
    #allocation6 [shape = 's32[1]{0}', space=sflag, size = 0x4, scoped, tag = 'scoped memory for tpu_custom_call.1']
    #allocation7 [shape = 'u8[512]{0}', space=vmem, size = 0x400, scoped, tag = 'input window, operand 2, single buffered']
    #allocation8 [shape = 'u8[65536]{0}', space=vmem, size = 0x10000, scoped, tag = 'output window, operand 0, single buffered']
    %8 = vsyncpa [#allocation3], 0
    %9 = vsyncpa [#allocation6], 0
    %10 = vsyncpa [#allocation4], 0
    // Predicated region
    $region2: #{tpu_custom_call.1} parent=1 // pred_check
      _
    $region3: #{tpu_custom_call.1} parent=1 // pred_check_branch
      %12 = sbr.rel (0) target = $region5
    $region4: #{tpu_custom_call.1} parent=1 // pred_region
      %s14 = ssub.s32 2048, 2048
      %15 = vsyncadd [#allocation3], %s14
      %s16 = sshll.u32 [#allocation2], 4
      %s17 = int_to_ptr.vmem [resolvable:$true] %s16
      %22 = dma.hbm_to_vmem [thread:$0]  %s0, 2048, %s17, [#allocation3], 128, 128, 8
    $region5: #{tpu_custom_call.1} parent=1 // pred_fallthru
      _
    // Predicated region
    $region6: #{tpu_custom_call.1} parent=1 // pred_check
      _
    $region7: #{tpu_custom_call.1} parent=1 // pred_check_branch
      %24 = sbr.rel (0) target = $region9
    $region8: #{tpu_custom_call.1} parent=1 // pred_region
      %s26 = ssub.s32 640, 640
      %27 = vsyncadd [#allocation6], %s26
      %s28 = sshll.u32 [#allocation5], 4
      %s29 = int_to_ptr.vmem [resolvable:$true] %s28
      %34 = dma.hbm_to_vmem [thread:$0]  %s1, 640, %s29, [#allocation6], 128, 128, 8
    $region9: #{tpu_custom_call.1} parent=1 // pred_fallthru
      _
    // Predicated region
    $region10: #{tpu_custom_call.1} parent=1 // pred_check
      _
    $region11: #{tpu_custom_call.1} parent=1 // pred_check_branch
      %36 = sbr.rel (0) target = $region13
    $region12: #{tpu_custom_call.1} parent=1 // pred_region
      %s38 = ssub.s32 16, 16
      %39 = vsyncadd [#allocation6], %s38
      %s41 = sshll.u32 [#allocation7], 4
      %s42 = int_to_ptr.vmem [resolvable:$true] %s41
      %44 = dma.hbm_to_vmem [thread:$0]  %s2, 16, %s42, [#allocation6]
    $region13: #{tpu_custom_call.1} parent=1 // pred_fallthru
      _
    // Predicated region
    $region14: #{tpu_custom_call.1} parent=1 // pred_check
      _
    $region15: #{tpu_custom_call.1} parent=1 // pred_check_branch
      %46 = sbr.rel (0) target = $region17
    $region16: #{tpu_custom_call.1} parent=1 // pred_region
      %47 = dma.done [#allocation3], 2048
    $region17: #{tpu_custom_call.1} parent=1 // pred_fallthru
      _
    // Predicated region
    $region18: #{tpu_custom_call.1} parent=1 // pred_check
      _
    $region19: #{tpu_custom_call.1} parent=1 // pred_check_branch
      %49 = sbr.rel (0) target = $region21
    $region20: #{tpu_custom_call.1} parent=1 // pred_region
      %50 = dma.done [#allocation6], 640
    $region21: #{tpu_custom_call.1} parent=1 // pred_fallthru
      _
    // Predicated region
    $region22: #{tpu_custom_call.1} parent=1 // pred_check
      _
    $region23: #{tpu_custom_call.1} parent=1 // pred_check_branch
      %52 = sbr.rel (0) target = $region25
    $region24: #{tpu_custom_call.1} parent=1 // pred_region
      %53 = dma.done [#allocation6], 16
    $region25: #{tpu_custom_call.1} parent=1 // pred_fallthru
      _
    %v54 = vld [vmem:[#allocation2] sm:$0xff]
    %v55 = vld [vmem:[#allocation2 + $0x8] sm:$0xff]
    %v56 = vld [vmem:[#allocation2 + $0x10] sm:$0xff]
    %v57 = vld [vmem:[#allocation2 + $0x18] sm:$0xff]
    %v58 = vld [vmem:[#allocation2 + $0x20] sm:$0xff]
    %v59 = vld [vmem:[#allocation2 + $0x28] sm:$0xff]
    %v60 = vld [vmem:[#allocation2 + $0x30] sm:$0xff]
    %v61 = vld [vmem:[#allocation2 + $0x38] sm:$0xff]
    %v62 = vld [vmem:[#allocation2 + $0x40] sm:$0xff]
    %v63 = vld [vmem:[#allocation2 + $0x48] sm:$0xff]
    %v64 = vld [vmem:[#allocation2 + $0x50] sm:$0xff]
    %v65 = vld [vmem:[#allocation2 + $0x58] sm:$0xff]
    %v66 = vld [vmem:[#allocation2 + $0x60] sm:$0xff]
    %v67 = vld [vmem:[#allocation2 + $0x68] sm:$0xff]
    %v68 = vld [vmem:[#allocation2 + $0x70] sm:$0xff]
    %v69 = vld [vmem:[#allocation2 + $0x78] sm:$0xff]
    %v70 = vld [vmem:[#allocation5] sm:$0xff]
    %v71 = vld [vmem:[#allocation5 + $0x8] sm:$0xff]
    %v72 = vld [vmem:[#allocation5 + $0x10] sm:$0xff]
    %v73 = vld [vmem:[#allocation5 + $0x18] sm:$0xff]
    %v74 = vld [vmem:[#allocation5 + $0x20] sm:$0xf]
    %v75 = vld [vmem:[#allocation7] sm:$0x1]
    %v77 = vlaneseq
    %v78 = vshrl.u32 %v77, 7
    %v79 = vsub.s32 0, %v78
    %v80 = vrot.slane %v75, %v79
    %vm82 = vcmask 293888
    %v84 = vsel %vm82, %v54, 0
    %v87 = vsel %vm82, %v55, 0
    %v90 = vsel %vm82, %v56, 0
    %v93 = vsel %vm82, %v57, 0
    %v96 = vsel %vm82, %v58, 0
    %v99 = vsel %vm82, %v59, 0
    %v102 = vsel %vm82, %v60, 0
    %v105 = vsel %vm82, %v61, 0
    %v108 = vsel %vm82, %v62, 0
    %v111 = vsel %vm82, %v63, 0
    %v114 = vsel %vm82, %v64, 0
    %v117 = vsel %vm82, %v65, 0
    %v120 = vsel %vm82, %v66, 0
    %v123 = vsel %vm82, %v67, 0
    %v126 = vsel %vm82, %v68, 0
    %v129 = vsel %vm82, %v69, 0
    %vm131 = vcmask 1043456
    %v133 = vsel %vm131, %v74, 0
    %135 = vmatprep.subr.mxu0 0.0
    %136 = vmatpush1.msra.mxu0 %v70
    %137 = vmatprep.subr.mxu0 0.0
    %138 = vmatpush1.msra.mxu0 %v71
    %139 = vmatprep.subr.mxu0 0.0
    %140 = vmatpush1.msra.mxu0 %v72
    %141 = vmatprep.subr.mxu0 0.0
    %142 = vmatpush1.msra.mxu0 %v73
    %143 = vmatprep.subr.mxu0 0.0
    %144 = vmatpush1.msra.mxu0 %v133
    %145 = vmatprep.subr.mxu0 0.0
    %146 = vmatpush1.msra.mxu0 0.0
    %147 = vmatprep.subr.mxu0 0.0
    %148 = vmatpush1.msra.mxu0 0.0
    %149 = vmatprep.subr.mxu0 0.0
    %150 = vmatpush1.msra.mxu0 0.0
    %151 = vmatprep.subr.mxu0 0.0
    %152 = vmatpush1.msra.mxu0 0.0
    %153 = vmatprep.subr.mxu0 0.0
    %154 = vmatpush1.msra.mxu0 0.0
    %155 = vmatprep.subr.mxu0 0.0
    %156 = vmatpush1.msra.mxu0 0.0
    %157 = vmatprep.subr.mxu0 0.0
    %158 = vmatpush1.msra.mxu0 0.0
    %159 = vmatprep.subr.mxu0 0.0
    %160 = vmatpush1.msra.mxu0 0.0
    %161 = vmatprep.subr.mxu0 0.0
    %162 = vmatpush1.msra.mxu0 0.0
    %163 = vmatprep.subr.mxu0 0.0
    %164 = vmatpush1.msra.mxu0 0.0
    %165 = vmatprep.subr.mxu0 0.0
    %166 = vmatpush1.msra.mxu0 0.0
    %167 = vmatprep.subr.mxu0 0.0
    %168 = vmatpush1.msra.mxu0 0.0
    %169 = vmatprep.subr.mxu0 0.0
    %170 = vmatpush1.msra.mxu0 0.0
    %171 = vmatprep.subr.mxu0 0.0
    %172 = vmatpush1.msra.mxu0 0.0
    %173 = vmatprep.subr.mxu0 0.0
    %174 = vmatpush1.msra.mxu0 0.0
    %175 = vmatprep.subr.mxu0 0.0
    %176 = vmatpush1.msra.mxu0 0.0
    %177 = vmatprep.subr.mxu0 0.0
    %178 = vmatpush1.msra.mxu0 0.0
    %179 = vmatprep.subr.mxu0 0.0
    %180 = vmatpush1.msra.mxu0 0.0
    %181 = vmatprep.subr.mxu0 0.0
    %182 = vmatpush1.msra.mxu0 0.0
    %183 = vmatprep.subr.mxu0 0.0
    %184 = vmatpush1.msra.mxu0 0.0
    %185 = vmatprep.subr.mxu0 0.0
    %186 = vmatpush1.msra.mxu0 0.0
    %187 = vmatprep.subr.mxu0 0.0
    %188 = vmatpush1.msra.mxu0 0.0
    %189 = vmatprep.subr.mxu0 0.0
    %190 = vmatpush1.msra.mxu0 0.0
    %191 = vmatprep.subr.mxu0 0.0
    %192 = vmatpush1.msra.mxu0 0.0
    %193 = vmatprep.subr.mxu0 0.0
    %194 = vmatpush1.msra.mxu0 0.0
    %195 = vmatprep.subr.mxu0 0.0
    %196 = vmatpush1.msra.mxu0 0.0
    %197 = vmatprep.subr.mxu0 0.0
    %198 = vmatpush1.msra.mxu0 0.0
    %199 = vmatprep.mubr.f32.mxu0 0.0
    %200 = vmatmul.mubr.f32.gmra.mrb[0].mxu0 %v84
    %v201 = vpop.f32.mrb[0].mxu0
    %v202 = vadd.f32 %v80, %v201
    %v203 = vpop.f32.mrb[0].mxu0
    %204 = vmatprep.mubr.f32.mxu0 0.0
    %205 = vmatmul.mubr.f32.gmra.mrb[0].mxu0 %v87
    %v206 = vpop.f32.mrb[0].mxu0
    %v207 = vadd.f32 %v80, %v206
    %v208 = vpop.f32.mrb[0].mxu0
    %209 = vmatprep.mubr.f32.mxu0 0.0
    %210 = vmatmul.mubr.f32.gmra.mrb[0].mxu0 %v90
    %v211 = vpop.f32.mrb[0].mxu0
    %v212 = vadd.f32 %v80, %v211
    %v213 = vpop.f32.mrb[0].mxu0
    %214 = vmatprep.mubr.f32.mxu0 0.0
    %215 = vmatmul.mubr.f32.gmra.mrb[0].mxu0 %v93
    %v216 = vpop.f32.mrb[0].mxu0
    %v217 = vadd.f32 %v80, %v216
    %v218 = vpop.f32.mrb[0].mxu0
    %219 = vmatprep.mubr.f32.mxu0 0.0
    %220 = vmatmul.mubr.f32.gmra.mrb[0].mxu0 %v96
    %v221 = vpop.f32.mrb[0].mxu0
    %v222 = vadd.f32 %v80, %v221
    %v223 = vpop.f32.mrb[0].mxu0
    %224 = vmatprep.mubr.f32.mxu0 0.0
    %225 = vmatmul.mubr.f32.gmra.mrb[0].mxu0 %v99
    %v226 = vpop.f32.mrb[0].mxu0
    %v227 = vadd.f32 %v80, %v226
    %v228 = vpop.f32.mrb[0].mxu0
    %229 = vmatprep.mubr.f32.mxu0 0.0
    %230 = vmatmul.mubr.f32.gmra.mrb[0].mxu0 %v102
    %v231 = vpop.f32.mrb[0].mxu0
    %v232 = vadd.f32 %v80, %v231
    %v233 = vpop.f32.mrb[0].mxu0
    %234 = vmatprep.mubr.f32.mxu0 0.0
    %235 = vmatmul.mubr.f32.gmra.mrb[0].mxu0 %v105
    %v236 = vpop.f32.mrb[0].mxu0
    %v237 = vadd.f32 %v80, %v236
    %v238 = vpop.f32.mrb[0].mxu0
    %239 = vmatprep.mubr.f32.mxu0 0.0
    %240 = vmatmul.mubr.f32.gmra.mrb[0].mxu0 %v108
    %v241 = vpop.f32.mrb[0].mxu0
    %v242 = vadd.f32 %v80, %v241
    %v243 = vpop.f32.mrb[0].mxu0
    %244 = vmatprep.mubr.f32.mxu0 0.0
    %245 = vmatmul.mubr.f32.gmra.mrb[0].mxu0 %v111
    %v246 = vpop.f32.mrb[0].mxu0
    %v247 = vadd.f32 %v80, %v246
    %v248 = vpop.f32.mrb[0].mxu0
    %249 = vmatprep.mubr.f32.mxu0 0.0
    %250 = vmatmul.mubr.f32.gmra.mrb[0].mxu0 %v114
    %v251 = vpop.f32.mrb[0].mxu0
    %v252 = vadd.f32 %v80, %v251
    %v253 = vpop.f32.mrb[0].mxu0
    %254 = vmatprep.mubr.f32.mxu0 0.0
    %255 = vmatmul.mubr.f32.gmra.mrb[0].mxu0 %v117
    %v256 = vpop.f32.mrb[0].mxu0
    %v257 = vadd.f32 %v80, %v256
    %v258 = vpop.f32.mrb[0].mxu0
    %259 = vmatprep.mubr.f32.mxu0 0.0
    %260 = vmatmul.mubr.f32.gmra.mrb[0].mxu0 %v120
    %v261 = vpop.f32.mrb[0].mxu0
    %v262 = vadd.f32 %v80, %v261
    %v263 = vpop.f32.mrb[0].mxu0
    %264 = vmatprep.mubr.f32.mxu0 0.0
    %265 = vmatmul.mubr.f32.gmra.mrb[0].mxu0 %v123
    %v266 = vpop.f32.mrb[0].mxu0
    %v267 = vadd.f32 %v80, %v266
    %v268 = vpop.f32.mrb[0].mxu0
    %269 = vmatprep.mubr.f32.mxu0 0.0
    %270 = vmatmul.mubr.f32.gmra.mrb[0].mxu0 %v126
    %v271 = vpop.f32.mrb[0].mxu0
    %v272 = vadd.f32 %v80, %v271
    %v273 = vpop.f32.mrb[0].mxu0
    %274 = vmatprep.mubr.f32.mxu0 0.0
    %275 = vmatmul.mubr.f32.gmra.mrb[0].mxu0 %v129
    %v276 = vpop.f32.mrb[0].mxu0
    %v277 = vadd.f32 %v80, %v276
    %v278 = vpop.f32.mrb[0].mxu0
    %279 = vdwg.mxu0
    %280 = vst [vmem:[#allocation8] sm:$0xff] %v202
    %281 = vst [vmem:[#allocation8 + $0x8] sm:$0xff] %v207
    %282 = vst [vmem:[#allocation8 + $0x10] sm:$0xff] %v212
    %283 = vst [vmem:[#allocation8 + $0x18] sm:$0xff] %v217
    %284 = vst [vmem:[#allocation8 + $0x20] sm:$0xff] %v222
    %285 = vst [vmem:[#allocation8 + $0x28] sm:$0xff] %v227
    %286 = vst [vmem:[#allocation8 + $0x30] sm:$0xff] %v232
    %287 = vst [vmem:[#allocation8 + $0x38] sm:$0xff] %v237
    %288 = vst [vmem:[#allocation8 + $0x40] sm:$0xff] %v242
    %289 = vst [vmem:[#allocation8 + $0x48] sm:$0xff] %v247
    %290 = vst [vmem:[#allocation8 + $0x50] sm:$0xff] %v252
    %291 = vst [vmem:[#allocation8 + $0x58] sm:$0xff] %v257
    %292 = vst [vmem:[#allocation8 + $0x60] sm:$0xff] %v262
    %293 = vst [vmem:[#allocation8 + $0x68] sm:$0xff] %v267
    %294 = vst [vmem:[#allocation8 + $0x70] sm:$0xff] %v272
    %295 = vst [vmem:[#allocation8 + $0x78] sm:$0xff] %v277
    // Predicated region
    $region26: #{tpu_custom_call.1} parent=1 // pred_check
      _
    $region27: #{tpu_custom_call.1} parent=1 // pred_check_branch
      %297 = sbr.rel (0) target = $region29
    $region28: #{tpu_custom_call.1} parent=1 // pred_region
      %s299 = ssub.s32 2048, 2048
      %300 = vsyncadd [#allocation4], %s299
      %s301 = sshll.u32 [#allocation8], 4
      %s302 = int_to_ptr.vmem [resolvable:$true] %s301
      %307 = dma.vmem_to_hbm [thread:$0]  %s302, 2048, %s3, [#allocation4], 128, 128, 8
    $region29: #{tpu_custom_call.1} parent=1 // pred_fallthru
      _
    // Predicated region
    $region30: #{tpu_custom_call.1} parent=1 // pred_check
      _
    $region31: #{tpu_custom_call.1} parent=1 // pred_check_branch
      %309 = sbr.rel (0) target = $region33
    $region32: #{tpu_custom_call.1} parent=1 // pred_region
      %310 = dma.done [#allocation4], 2048
    $region33: #{tpu_custom_call.1} parent=1 // pred_fallthru
      _
    %311 = vsyncpa [#allocation3], 1
    %312 = vsyncpa [#allocation6], 1
    %313 = vsyncpa [#allocation4], 1

</llo_original>
